<compile_context>
chip_gen: v7x
topology: tpu7x:2x2x1
jax: 0.10.0
libtpu: 0.0.40
codegen_flags: <defaults>
</compile_context>

<pallas_src>
import math

import jax
import jax.numpy as jnp
from jax.experimental import pallas as pl
from jax.experimental.pallas import tpu as pltpu

_LANE = 128
# 4096 rows * 128 lanes * 4 B = 2 MiB per f32 buffer per grid step.
_MAX_TILE_ROWS = 4096


def _log_bernoulli_kernel(x_ref, y_ref, o_ref):
    x = x_ref[...].astype(jnp.float32)
    y = y_ref[...].astype(jnp.float32)
    # Stable: -(max(x,0) - x*y + log1p(exp(-|x|)))
    out = x * y - jnp.maximum(x, 0.0) - jnp.log1p(jnp.exp(-jnp.abs(x)))
    o_ref[...] = out.astype(o_ref.dtype)


def log_bernoulli_prob(inputs, targets):
    """Elementwise -BCEWithLogits(inputs, targets), any shape."""
    assert inputs.shape == targets.shape
    orig_shape = inputs.shape
    out_dtype = inputs.dtype
    total = math.prod(orig_shape) if orig_shape else 1

    x_flat = jnp.ravel(inputs)
    y_flat = jnp.ravel(targets)

    # Only pad (at most 127 elements) when the flat length is not lane-aligned.
    pad = (-total) % _LANE
    if pad:
        x_flat = jnp.pad(x_flat, (0, pad))
        y_flat = jnp.pad(y_flat, (0, pad))
    rows = (total + pad) // _LANE

    x2d = x_flat.reshape(rows, _LANE)
    y2d = y_flat.reshape(rows, _LANE)

    if rows <= _MAX_TILE_ROWS:
        # Single block equal to the full array (always a legal block shape).
        tile_rows = rows
    else:
        # Multiple of 8; a ragged last block is handled by Pallas masking,
        # which is safe for a purely elementwise kernel.
        tile_rows = _MAX_TILE_ROWS
    grid = (pl.cdiv(rows, tile_rows),)

    bytes_accessed = total * (
        jnp.dtype(inputs.dtype).itemsize
        + jnp.dtype(targets.dtype).itemsize
        + jnp.dtype(out_dtype).itemsize
    )
    cost = pl.CostEstimate(
        flops=5 * total,
        transcendentals=2 * total,
        bytes_accessed=bytes_accessed,
    )

    out2d = pl.pallas_call(
        _log_bernoulli_kernel,
        out_shape=jax.ShapeDtypeStruct((rows, _LANE), out_dtype),
        grid_spec=pltpu.PrefetchScalarGridSpec(
            num_scalar_prefetch=0,
            grid=grid,
            in_specs=[
                pl.BlockSpec((tile_rows, _LANE), lambda i: (i, 0)),
                pl.BlockSpec((tile_rows, _LANE), lambda i: (i, 0)),
            ],
            out_specs=pl.BlockSpec((tile_rows, _LANE), lambda i: (i, 0)),
        ),
        compiler_params=pltpu.CompilerParams(
            dimension_semantics=("parallel",),
            # ~12 MiB live; 32 MiB scoped limit is safe on every generation
            # (v5e/v6e 128 MiB physical, v7x 64 MiB physical).
            vmem_limit_bytes=32 << 20,
        ),
        cost_estimate=cost,
    )(x2d, y2d)

    out_flat = out2d.reshape(-1)
    if pad:
        out_flat = out_flat[:total]
    return out_flat.reshape(orig_shape)


def _reference(inputs, targets):
    x = inputs.astype(jnp.float32)
    y = targets.astype(jnp.float32)
    return -(jnp.maximum(x, 0.0) - x * y + jnp.log1p(jnp.exp(-jnp.abs(x))))


if __name__ == "__main__":
    key = jax.random.PRNGKey(0)
    k1, k2 = jax.random.split(key)
    # NCHW inputs, small shapes: batch=2, channels=4, spatial=16x16
    x = jax.random.normal(k1, (2, 4, 16, 16), dtype=jnp.float32) * 3.0
    # targets in {0, 1} as in BCE usage
    target = (jax.random.uniform(k2, (2, 4, 16, 16)) > 0.5).astype(jnp.float32)

    out = log_bernoulli_prob(x, target)
    out = jax.block_until_ready(out)

    ref = _reference(x, target)
    assert out.shape == x.shape
    assert jnp.allclose(out, ref, atol=1e-5, rtol=1e-5), (
        float(jnp.max(jnp.abs(out - ref)))
    )
    print("KERNEL_OK")
</pallas_src>

<mosaic_0001>
module attributes {stable_mosaic.version = 11 : i64} {
  func.func @_log_bernoulli_kernel(%arg0: i32, %arg1: memref<16x128xf32, #tpu.memory_space<vmem>>, %arg2: memref<16x128xf32, #tpu.memory_space<vmem>>, %arg3: memref<16x128xf32, #tpu.memory_space<vmem>>) attributes {dimension_semantics = [#tpu.dimension_semantics<parallel>], iteration_bounds = array<i64: 1>, scalar_prefetch = 0 : i64, scratch_operands = 0 : i64, tpu.core_type = #tpu.core_type<tc>, window_params = [{transform_indices = @transform_0, window_bounds = array<i64: 16, 128>}, {transform_indices = @transform_1, window_bounds = array<i64: 16, 128>}, {transform_indices = @transform_2, window_bounds = array<i64: 16, 128>}]} {
    %c0 = arith.constant 0 : index
    %c0_0 = arith.constant 0 : index
    %0 = vector.load %arg1[%c0, %c0_0] : memref<16x128xf32, #tpu.memory_space<vmem>>, vector<16x128xf32>
    %c0_1 = arith.constant 0 : index
    %c0_2 = arith.constant 0 : index
    %1 = vector.load %arg2[%c0_1, %c0_2] : memref<16x128xf32, #tpu.memory_space<vmem>>, vector<16x128xf32>
    %2 = arith.mulf %0, %1 : vector<16x128xf32>
    %cst = arith.constant 0.000000e+00 : f32
    %3 = vector.broadcast %cst : f32 to vector<16x128xf32>
    %4 = arith.maximumf %0, %3 : vector<16x128xf32>
    %5 = arith.subf %2, %4 : vector<16x128xf32>
    %6 = math.absf %0 : vector<16x128xf32>
    %cst_3 = arith.constant 0.000000e+00 : f32
    %7 = vector.broadcast %cst_3 : f32 to vector<16x128xf32>
    %8 = arith.subf %7, %6 : vector<16x128xf32>
    %9 = math.exp %8 : vector<16x128xf32>
    %10 = math.log1p %9 : vector<16x128xf32>
    %11 = arith.subf %5, %10 : vector<16x128xf32>
    %c0_4 = arith.constant 0 : index
    %c0_5 = arith.constant 0 : index
    %12 = vector.load %arg3[%c0_4, %c0_5] : memref<16x128xf32, #tpu.memory_space<vmem>>, vector<16x128xf32>
    tpu.vector_store %arg3[%c0_4, %c0_5], %11 {strides = array<i32>} : memref<16x128xf32, #tpu.memory_space<vmem>>, vector<16x128xf32>,
    return
  }
  func.func @transform_0(%arg0: i32) -> (i32, i32) {
    %c0_i32 = arith.constant 0 : i32
    %c0_i32_0 = arith.constant 0 : i32
    return %arg0, %c0_i32 : i32, i32
  }
  func.func @transform_1(%arg0: i32) -> (i32, i32) {
    %c0_i32 = arith.constant 0 : i32
    %c0_i32_0 = arith.constant 0 : i32
    return %arg0, %c0_i32 : i32, i32
  }
  func.func @transform_2(%arg0: i32) -> (i32, i32) {
    %c0_i32 = arith.constant 0 : i32
    %c0_i32_0 = arith.constant 0 : i32
    return %arg0, %c0_i32 : i32, i32
  }
}

</mosaic_0001>

<llo_original>
// kernel: tpu_custom_call.1
$region0: #{tpu_custom_call.1}
  #allocation0 [shape = 'u32[]', space=smem, size = 0x4, offset = 0x4, fixed_abs, tag = 'smem constant byte address 0x4 - core index']
  #allocation1 [shape = 'u32[144,128]{1,0:T(1,128)}', space=vmem, size = 0x12000, scoped, tag = 'internal scratch']
  %s0 = inlined_call_operand.hbm [shape: f32[16,128], index: 0, kind: input, shape index: {}]
  %s1 = inlined_call_operand.hbm [shape: f32[16,128], index: 1, kind: input, shape index: {}]
  %s2 = inlined_call_operand.hbm [shape: f32[16,128], index: 2, kind: output, shape index: {}]
  %s3 = sld [smem:[#allocation0]]
  $region26: #{tpu_custom_call.1} parent=0
    _
  %s5 = ssub.s32 1, %s3
  %s6 = scalar_select 0, %s5, %s3
  $region1: #{tpu_custom_call.1} parent=0
    #allocation2 [shape = 'u8[8192]{0}', space=vmem, size = 0x2000, scoped, tag = 'input window, operand 0, single buffered']
    #allocation3 [shape = 's32[1]{0}', space=sflag, size = 0x4, scoped, tag = 'scoped memory for tpu_custom_call.1']
    #allocation4 [shape = 's32[1]{0}', space=sflag, size = 0x4, scoped, tag = 'scoped memory for tpu_custom_call.1']
    #allocation5 [shape = 'u8[8192]{0}', space=vmem, size = 0x2000, scoped, tag = 'input window, operand 1, single buffered']
    #allocation6 [shape = 's32[1]{0}', space=sflag, size = 0x4, scoped, tag = 'scoped memory for tpu_custom_call.1']
    #allocation7 [shape = 'u8[8192]{0}', space=vmem, size = 0x2000, scoped, tag = 'output window, operand 0, single buffered']
    %7 = vsyncpa [#allocation3], 0
    %8 = vsyncpa [#allocation6], 0
    %9 = vsyncpa [#allocation4], 0
    // Predicated region
    $region2: #{tpu_custom_call.1} parent=1 // pred_check
      _
    $region3: #{tpu_custom_call.1} parent=1 // pred_check_branch
      %11 = sbr.rel (0) target = $region5
    $region4: #{tpu_custom_call.1} parent=1 // pred_region
      %s13 = ssub.s32 256, 256
      %14 = vsyncadd [#allocation3], %s13
      %s15 = sshll.u32 [#allocation2], 4
      %s16 = int_to_ptr.vmem [resolvable:$true] %s15
      %21 = dma.hbm_to_vmem [thread:$0]  %s0, 256, %s16, [#allocation3], 128, 128, 8
    $region5: #{tpu_custom_call.1} parent=1 // pred_fallthru
      _
    // Predicated region
    $region6: #{tpu_custom_call.1} parent=1 // pred_check
      _
    $region7: #{tpu_custom_call.1} parent=1 // pred_check_branch
      %23 = sbr.rel (0) target = $region9
    $region8: #{tpu_custom_call.1} parent=1 // pred_region
      %s25 = ssub.s32 256, 256
      %26 = vsyncadd [#allocation6], %s25
      %s27 = sshll.u32 [#allocation5], 4
      %s28 = int_to_ptr.vmem [resolvable:$true] %s27
      %33 = dma.hbm_to_vmem [thread:$0]  %s1, 256, %s28, [#allocation6], 128, 128, 8
    $region9: #{tpu_custom_call.1} parent=1 // pred_fallthru
      _
    // Predicated region
    $region10: #{tpu_custom_call.1} parent=1 // pred_check
      _
    $region11: #{tpu_custom_call.1} parent=1 // pred_check_branch
      %35 = sbr.rel (0) target = $region13
    $region12: #{tpu_custom_call.1} parent=1 // pred_region
      %36 = dma.done [#allocation3], 256
    $region13: #{tpu_custom_call.1} parent=1 // pred_fallthru
      _
    // Predicated region
    $region14: #{tpu_custom_call.1} parent=1 // pred_check
      _
    $region15: #{tpu_custom_call.1} parent=1 // pred_check_branch
      %38 = sbr.rel (0) target = $region17
    $region16: #{tpu_custom_call.1} parent=1 // pred_region
      %39 = dma.done [#allocation6], 256
    $region17: #{tpu_custom_call.1} parent=1 // pred_fallthru
      _
    %v40 = vld [vmem:[#allocation2] sm:$0xff]
    %v41 = vld [vmem:[#allocation2 + $0x8] sm:$0xff]
    %v42 = vld [vmem:[#allocation5] sm:$0xff]
    %v43 = vld [vmem:[#allocation5 + $0x8] sm:$0xff]
    %v44 = vmul.f32 %v40, %v42
    %v45 = vmul.f32 %v41, %v43
    %v46 = vmax.f32 %v40, 0.0
    %v47 = vmax.f32 %v41, 0.0
    %v48 = vsub.f32 %v44, %v46
    %v49 = vsub.f32 %v45, %v47
    %v50 = vand.u32 2147483647, %v40
    %v51 = vand.u32 2147483647, %v41
    %v52 = vsub.f32 0.0, %v50
    %v53 = vsub.f32 0.0, %v51
    %v54 = vmul.f32 %v52, 1.442695
    %v55 = vpow.pop %v54
    %v56 = vmul.f32 %v53, 1.442695
    %v57 = vpow.pop %v56
    %v58 = vadd.f32 %v55, 1.0
    %v59 = vlog2.pop %v58
    %v60 = vmul.f32 %v59, 0.6931472
    %v61 = vmul.f32 -0.5, %v55
    %v62 = vadd.f32 %v61, 1.0
    %v63 = vmul.f32 %v62, %v55
    %v64 = vand.u32 2147483647, %v55
    %vm65 = vcmp.lt.f32.partialorder %v64, 0.0004427343
    %v66 = vsel %vm65, %v63, %v60
    %v67 = vadd.f32 %v57, 1.0
    %v68 = vlog2.pop %v67
    %v69 = vmul.f32 %v68, 0.6931472
    %v70 = vmul.f32 -0.5, %v57
    %v71 = vadd.f32 %v70, 1.0
    %v72 = vmul.f32 %v71, %v57
    %v73 = vand.u32 2147483647, %v57
    %vm74 = vcmp.lt.f32.partialorder %v73, 0.0004427343
    %v75 = vsel %vm74, %v72, %v69
    %v76 = vsub.f32 %v48, %v66
    %v77 = vsub.f32 %v49, %v75
    %78 = vst [vmem:[#allocation7] sm:$0xff] %v76
    %79 = vst [vmem:[#allocation7 + $0x8] sm:$0xff] %v77
    // Predicated region
    $region18: #{tpu_custom_call.1} parent=1 // pred_check
      _
    $region19: #{tpu_custom_call.1} parent=1 // pred_check_branch
      %81 = sbr.rel (0) target = $region21
    $region20: #{tpu_custom_call.1} parent=1 // pred_region
      %s83 = ssub.s32 256, 256
      %84 = vsyncadd [#allocation4], %s83
      %s85 = sshll.u32 [#allocation7], 4
      %s86 = int_to_ptr.vmem [resolvable:$true] %s85
      %91 = dma.vmem_to_hbm [thread:$0]  %s86, 256, %s2, [#allocation4], 128, 128, 8
    $region21: #{tpu_custom_call.1} parent=1 // pred_fallthru
      _
    // Predicated region
    $region22: #{tpu_custom_call.1} parent=1 // pred_check
      _
    $region23: #{tpu_custom_call.1} parent=1 // pred_check_branch
      %93 = sbr.rel (0) target = $region25
    $region24: #{tpu_custom_call.1} parent=1 // pred_region
      %94 = dma.done [#allocation4], 256
    $region25: #{tpu_custom_call.1} parent=1 // pred_fallthru
      _
    %95 = vsyncpa [#allocation3], 1
    %96 = vsyncpa [#allocation6], 1
    %97 = vsyncpa [#allocation4], 1

</llo_original>
